<compile_context>
chip_gen: v6e
topology: v6e:2x2x1
jax: 0.10.0
libtpu: 0.0.40
codegen_flags: <defaults>
</compile_context>

<pallas_src>
import math
from functools import partial

import jax
import jax.numpy as jnp
from jax.experimental import pallas as pl
from jax.experimental.pallas import tpu as pltpu

# ---- model hyper-parameters (mirrors ModelAttention.__init__) ------------------------------
INPUT_SIZE = 30
OUTPUT_SIZE = 8
SELF_HEADS = 8
CROSS_HEADS = 1
EMBED_VOCAB = [f"tok{i}" for i in range(12)]
EMBED_DIM = 16   # EncoderEmbeddingLayer.output_dim (the layer itself is not provided)
NEW_EMBED_DIM = ((INPUT_SIZE // SELF_HEADS + 1) * SELF_HEADS
                 if INPUT_SIZE % SELF_HEADS != 0 else INPUT_SIZE)   # 32
XPAD = NEW_EMBED_DIM                                                # x zero-padded 30 -> 32


def geometric_series(min_n, max_n, reverse=False):
    s = [int(2 ** i) for i in range(min_n, max_n + 1)]
    return s[::-1] if reverse else s


GEO_FEAT_SERIES = geometric_series(5, math.floor(math.log2(NEW_EMBED_DIM)), reverse=True)   # [32]
GEO_FEAT_OUT = GEO_FEAT_SERIES[-1]                                                          # 32
GEO_FINAL_IN = GEO_FEAT_OUT + EMBED_DIM                                                     # 48
GEO_FINAL_SERIES = geometric_series(round(math.log2(OUTPUT_SIZE)),
                                    math.floor(math.log2(GEO_FINAL_IN)), reverse=True)      # [32,16,8]
D1, D2, D3 = GEO_FINAL_SERIES
assert len(GEO_FEAT_SERIES) == 1 and GEO_FINAL_SERIES == [32, 16, 8], \
    "kernel is specialized to these sizes"


# ---- Pallas kernel: whole forward hot path on one (features, block_b) batch tile -----------
# Packed-slab row layout (built in pack_params):
#   ws32 (176, 32): [adj 0:32 | self_vo 32:64 | cross_vo 64:96 | gf 96:128 | g1a 128:160 | g2 160:176]
#   ws16 ( 40, 16): [g1b 0:32 | g3 32:40]
#   bias ( 32, 16) columns: adj_b, svo_b, cvo_b, gf_b, gf_s, gf_t, g1_b, g1_s, g1_t,
#                           g2_b, g2_s, g2_t, g3_b, g3_s, g3_t, fin_b   (zero-padded to 32 rows)
def model_attention_kernel(xt_ref, embt_ref, ws32_ref, ws16_ref, wfin_ref, bias_ref, out_ref):
    f32 = jnp.float32
    relu = lambda h: jnp.maximum(h, 0.0)
    dot = lambda w, h: jnp.dot(w, h, preferred_element_type=f32)

    x = xt_ref[...]      # (32, bb)  feature-major, batch on lanes (rows 30:32 are zero pad)
    emb = embt_ref[...]  # (16, bb)

    def w32(i):          # i-th (32, 32) block of the 32-input packed weight slab
        return ws32_ref[32 * i:32 * (i + 1), :]

    def vec(col, dim):   # (dim, 1) column of the packed bias/BN slab; broadcasts over lanes
        return bias_ref[0:dim, col:col + 1]

    # GaussianNoise is identity at inference; adjust_dim_layer + ReLU
    h = relu(dot(w32(0), x) + vec(0, 32))                                # (32, bb)

    # self multi-head attention, seq_len == 1: softmax over one key == 1, so q/k are dead
    # and out_proj(v_proj(h)) is a single host-folded matmul.
    feat_attn = dot(w32(1), h) + vec(1, 32)                              # (32, bb)

    # cross attention, seq_len == 1: the query branch (embedding_projection) is dead too;
    # v/out projections host-folded.
    cross = dot(w32(2), feat_attn) + vec(2, 32)                          # (32, bb)

    # GeometricStepDownDenseLayer (eval): relu(Linear) -> Dropout=id -> relu(BN affine)
    def dense_bn_relu(z_pre, s, t):
        return relu(s * relu(z_pre) + t)

    # geo_step_features: 32 -> 32
    gs = dense_bn_relu(dot(w32(3), cross) + vec(3, 32), vec(4, 32), vec(5, 32))

    # geo_step_final: concat(gs, emb) (48) -> 32 -> 16 -> 8; concat implemented as a split matmul
    h1 = dense_bn_relu(dot(w32(4), gs) + dot(ws16_ref[0:32, :], emb) + vec(6, 32),
                       vec(7, 32), vec(8, 32))
    h2 = dense_bn_relu(dot(ws32_ref[160:176, :], h1) + vec(9, 16), vec(10, 16), vec(11, 16))
    h3 = dense_bn_relu(dot(ws16_ref[32:40, :], h2) + vec(12, 8), vec(13, 8), vec(14, 8))

    # final linear + ReLU (the reference applies torch.relu to final_ll's output)
    out_ref[...] = relu(dot(wfin_ref[...], h3) + vec(15, 8))


# ---- host-side parameter folding / packing --------------------------------------------------
def pack_params(p):
    """Done once on the host:
       * self/cross attention v->out projections fold to one matmul each (softmax == 1),
       * BatchNorm (eval) folds to per-feature scale/shift,
       * the concat-Linear of geo_step_final splits into two matmuls,
       * all weights packed into 3 slabs by input width, all vectors into one (32,16) slab.
    """
    def bn_fold(prefix):
        s = p[f"{prefix}_gamma"] / jnp.sqrt(p[f"{prefix}_var"] + 1e-5)
        return s, p[f"{prefix}_beta"] - p[f"{prefix}_mean"] * s

    w_svo = p["sa_wo"] @ p["sa_wv"]
    b_svo = p["sa_wo"] @ p["sa_bv"] + p["sa_bo"]
    w_cvo = p["ca_wo"] @ p["ca_wv"]
    b_cvo = p["ca_wo"] @ p["ca_bv"] + p["ca_bo"]

    g1_wa = p["g1_w"][:, :GEO_FEAT_OUT]     # applied to geo_step_features output
    g1_wb = p["g1_w"][:, GEO_FEAT_OUT:]     # applied to the embedding

    adj_w = jnp.pad(p["adj_w"], ((0, 0), (0, XPAD - INPUT_SIZE)))        # (32, 32)

    ws32 = jnp.concatenate([adj_w, w_svo, w_cvo, p["gf_w"], g1_wa, p["g2_w"]], axis=0)  # (176, 32)
    ws16 = jnp.concatenate([g1_wb, p["g3_w"]], axis=0)                                   # (40, 16)

    gf_s, gf_t = bn_fold("gf")
    g1_s, g1_t = bn_fold("g1")
    g2_s, g2_t = bn_fold("g2")
    g3_s, g3_t = bn_fold("g3")

    def col(v):                              # pad every vector to a 32-row column
        return jnp.pad(v, (0, NEW_EMBED_DIM - v.shape[0])).reshape(NEW_EMBED_DIM, 1)

    bias = jnp.concatenate([col(v) for v in (
        p["adj_b"], b_svo, b_cvo,
        p["gf_b"], gf_s, gf_t,
        p["g1_b"], g1_s, g1_t,
        p["g2_b"], g2_s, g2_t,
        p["g3_b"], g3_s, g3_t,
        p["fin_b"])], axis=1)                # (32, 16)

    return {"ws32": ws32, "ws16": ws16, "wfin": p["fin_w"], "bias": bias,
            "embed_table": p["embed_table"]}


def _round_up(n, m):
    return -(-n // m) * m


@partial(jax.jit, static_argnames=("block_b",))
def model_attention_forward(x, token_ids, packed, block_b=512):
    """x: (B, INPUT_SIZE) float32, token_ids: (B,) int32 -> (B, OUTPUT_SIZE) float32."""
    assert block_b % 128 == 0, "block_b must be lane-aligned (multiple of 128)"
    # TODO(synk): EncoderEmbeddingLayer is not provided in the source module; modeled as a
    # plain embedding-table lookup (glue outside the kernel) with output_dim = EMBED_DIM.
    emb = packed["embed_table"][token_ids]                               # (B, EMBED_DIM)

    B = x.shape[0]
    # Large batches: lane-aligned tiles of block_b rows (parallel grid axis feeds both v7x
    # TensorCores).  Small batches: one grid step covering the padded batch.
    bb = block_b if B >= block_b else max(8, _round_up(B, 8))
    B_pad = _round_up(B, bb)

    # batch-on-lanes layout: pad + transpose so features sit on sublanes, batch on lanes
    xt = jnp.pad(x, ((0, B_pad - B), (0, XPAD - x.shape[1]))).T          # (32, B_pad)
    embt = jnp.pad(emb, ((0, B_pad - B), (0, 0))).T                      # (16, B_pad)

    const = lambda i: (0, 0)
    out_t = pl.pallas_call(
        model_attention_kernel,
        out_shape=jax.ShapeDtypeStruct((OUTPUT_SIZE, B_pad), jnp.float32),
        grid=(B_pad // bb,),
        in_specs=[
            pl.BlockSpec((XPAD, bb), lambda i: (0, i)),
            pl.BlockSpec((EMBED_DIM, bb), lambda i: (0, i)),
            pl.BlockSpec(packed["ws32"].shape, const),
            pl.BlockSpec(packed["ws16"].shape, const),
            pl.BlockSpec(packed["wfin"].shape, const),
            pl.BlockSpec(packed["bias"].shape, const),
        ],
        out_specs=pl.BlockSpec((OUTPUT_SIZE, bb), lambda i: (0, i)),
        compiler_params=pltpu.CompilerParams(dimension_semantics=("parallel",)),
    )(xt, embt, packed["ws32"], packed["ws16"], packed["wfin"], packed["bias"])
    return out_t.T[:B]


# ---- deterministic parameter construction (PyTorch layout: Linear weight = (out, in)) -------
def init_params(key):
    def nrm(k, shape, scale=0.1):
        return jax.random.normal(k, shape, jnp.float32) * scale

    keys = iter(jax.random.split(key, 64))
    D, E = NEW_EMBED_DIM, EMBED_DIM
    p = {}
    p["embed_table"] = nrm(next(keys), (len(EMBED_VOCAB), E))
    p["adj_w"] = nrm(next(keys), (D, INPUT_SIZE))
    p["adj_b"] = nrm(next(keys), (D,))
    # q/k projections of both attention blocks are mathematically dead with seq_len == 1
    # (softmax over a single key is identically 1), so they are not materialized.
    for pre in ("sa", "ca"):
        p[f"{pre}_wv"] = nrm(next(keys), (D, D))
        p[f"{pre}_bv"] = nrm(next(keys), (D,))
        p[f"{pre}_wo"] = nrm(next(keys), (D, D))
        p[f"{pre}_bo"] = nrm(next(keys), (D,))

    def bn(prefix, dim):
        p[f"{prefix}_gamma"] = 1.0 + nrm(next(keys), (dim,))
        p[f"{prefix}_beta"] = nrm(next(keys), (dim,))
        p[f"{prefix}_mean"] = nrm(next(keys), (dim,))
        p[f"{prefix}_var"] = 1.0 + jnp.abs(nrm(next(keys), (dim,)))

    p["gf_w"] = nrm(next(keys), (GEO_FEAT_OUT, D)); p["gf_b"] = nrm(next(keys), (GEO_FEAT_OUT,))
    bn("gf", GEO_FEAT_OUT)
    p["g1_w"] = nrm(next(keys), (D1, GEO_FINAL_IN)); p["g1_b"] = nrm(next(keys), (D1,)); bn("g1", D1)
    p["g2_w"] = nrm(next(keys), (D2, D1)); p["g2_b"] = nrm(next(keys), (D2,)); bn("g2", D2)
    p["g3_w"] = nrm(next(keys), (D3, D2)); p["g3_b"] = nrm(next(keys), (D3,)); bn("g3", D3)
    p["fin_w"] = nrm(next(keys), (OUTPUT_SIZE, D3)); p["fin_b"] = nrm(next(keys), (OUTPUT_SIZE,))
    return p


if __name__ == "__main__":
    key = jax.random.PRNGKey(0)
    kx, kt, kp = jax.random.split(key, 3)
    B = 16
    x = jax.random.normal(kx, (B, INPUT_SIZE), jnp.float32)
    token_ids = jax.random.randint(kt, (B,), 0, len(EMBED_VOCAB))
    packed = pack_params(init_params(kp))

    out = model_attention_forward(x, token_ids, packed)
    jax.block_until_ready(out)
    assert out.shape == (B, OUTPUT_SIZE) and out.dtype == jnp.float32
    print("KERNEL_OK")
</pallas_src>

<mosaic_0001>
module attributes {stable_mosaic.version = 11 : i64} {
  func.func @model_attention_kernel(%arg0: i32, %arg1: memref<32x16xf32, #tpu.memory_space<vmem>>, %arg2: memref<16x16xf32, #tpu.memory_space<vmem>>, %arg3: memref<176x32xf32, #tpu.memory_space<vmem>>, %arg4: memref<40x16xf32, #tpu.memory_space<vmem>>, %arg5: memref<8x8xf32, #tpu.memory_space<vmem>>, %arg6: memref<32x16xf32, #tpu.memory_space<vmem>>, %arg7: memref<8x16xf32, #tpu.memory_space<vmem>>) attributes {dimension_semantics = [#tpu.dimension_semantics<parallel>], iteration_bounds = array<i64: 1>, scalar_prefetch = 0 : i64, scratch_operands = 0 : i64, tpu.core_type = #tpu.core_type<tc>, window_params = [{transform_indices = @transform_0, window_bounds = array<i64: 32, 16>}, {transform_indices = @transform_1, window_bounds = array<i64: 16, 16>}, {pipeline_mode = #tpu.pipeline_mode<synchronous>, transform_indices = @transform_2, window_bounds = array<i64: 176, 32>}, {pipeline_mode = #tpu.pipeline_mode<synchronous>, transform_indices = @transform_3, window_bounds = array<i64: 40, 16>}, {pipeline_mode = #tpu.pipeline_mode<synchronous>, transform_indices = @transform_4, window_bounds = array<i64: 8, 8>}, {pipeline_mode = #tpu.pipeline_mode<synchronous>, transform_indices = @transform_5, window_bounds = array<i64: 32, 16>}, {transform_indices = @transform_6, window_bounds = array<i64: 8, 16>}]} {
    %c0 = arith.constant 0 : index
    %c0_0 = arith.constant 0 : index
    %0 = vector.load %arg1[%c0, %c0_0] : memref<32x16xf32, #tpu.memory_space<vmem>>, vector<32x16xf32>
    %c0_1 = arith.constant 0 : index
    %c0_2 = arith.constant 0 : index
    %1 = vector.load %arg2[%c0_1, %c0_2] : memref<16x16xf32, #tpu.memory_space<vmem>>, vector<16x16xf32>
    %c0_3 = arith.constant 0 : index
    %c0_4 = arith.constant 0 : index
    %2 = vector.load %arg3[%c0_3, %c0_4] : memref<176x32xf32, #tpu.memory_space<vmem>>, vector<32x32xf32>
    %cst = arith.constant dense<0.000000e+00> : vector<32x16xf32>
    %3 = tpu.matmul %2, %0, %cst {dimension_numbers = #tpu.dot_dimension_numbers<[1], [0], [0], [1], [0, 0, 1, 1], [], []>} : vector<32x32xf32>, vector<32x16xf32>, vector<32x16xf32> -> vector<32x16xf32>
    %c0_5 = arith.constant 0 : index
    %c0_6 = arith.constant 0 : index
    %4 = vector.load %arg6[%c0_5, %c0_6] : memref<32x16xf32, #tpu.memory_space<vmem>>, vector<32x1xf32>
    %5 = vector.broadcast %4 : vector<32x1xf32> to vector<32x16xf32>
    %6 = arith.addf %3, %5 : vector<32x16xf32>
    %cst_7 = arith.constant 0.000000e+00 : f32
    %7 = vector.broadcast %cst_7 : f32 to vector<32x16xf32>
    %8 = arith.maximumf %6, %7 : vector<32x16xf32>
    %c32 = arith.constant 32 : index
    %c0_8 = arith.constant 0 : index
    %9 = vector.load %arg3[%c32, %c0_8] : memref<176x32xf32, #tpu.memory_space<vmem>>, vector<32x32xf32>
    %cst_9 = arith.constant dense<0.000000e+00> : vector<32x16xf32>
    %10 = tpu.matmul %9, %8, %cst_9 {dimension_numbers = #tpu.dot_dimension_numbers<[1], [0], [0], [1], [0, 0, 1, 1], [], []>} : vector<32x32xf32>, vector<32x16xf32>, vector<32x16xf32> -> vector<32x16xf32>
    %c0_10 = arith.constant 0 : index
    %c1 = arith.constant 1 : index
    %11 = vector.load %arg6[%c0_10, %c1] : memref<32x16xf32, #tpu.memory_space<vmem>>, vector<32x1xf32>
    %12 = vector.broadcast %11 : vector<32x1xf32> to vector<32x16xf32>
    %13 = arith.addf %10, %12 : vector<32x16xf32>
    %c64 = arith.constant 64 : index
    %c0_11 = arith.constant 0 : index
    %14 = vector.load %arg3[%c64, %c0_11] : memref<176x32xf32, #tpu.memory_space<vmem>>, vector<32x32xf32>
    %cst_12 = arith.constant dense<0.000000e+00> : vector<32x16xf32>
    %15 = tpu.matmul %14, %13, %cst_12 {dimension_numbers = #tpu.dot_dimension_numbers<[1], [0], [0], [1], [0, 0, 1, 1], [], []>} : vector<32x32xf32>, vector<32x16xf32>, vector<32x16xf32> -> vector<32x16xf32>
    %c0_13 = arith.constant 0 : index
    %c2 = arith.constant 2 : index
    %16 = vector.load %arg6[%c0_13, %c2] : memref<32x16xf32, #tpu.memory_space<vmem>>, vector<32x1xf32>
    %17 = vector.broadcast %16 : vector<32x1xf32> to vector<32x16xf32>
    %18 = arith.addf %15, %17 : vector<32x16xf32>
    %c96 = arith.constant 96 : index
    %c0_14 = arith.constant 0 : index
    %19 = vector.load %arg3[%c96, %c0_14] : memref<176x32xf32, #tpu.memory_space<vmem>>, vector<32x32xf32>
    %cst_15 = arith.constant dense<0.000000e+00> : vector<32x16xf32>
    %20 = tpu.matmul %19, %18, %cst_15 {dimension_numbers = #tpu.dot_dimension_numbers<[1], [0], [0], [1], [0, 0, 1, 1], [], []>} : vector<32x32xf32>, vector<32x16xf32>, vector<32x16xf32> -> vector<32x16xf32>
    %c0_16 = arith.constant 0 : index
    %c3 = arith.constant 3 : index
    %21 = vector.load %arg6[%c0_16, %c3] : memref<32x16xf32, #tpu.memory_space<vmem>>, vector<32x1xf32>
    %22 = vector.broadcast %21 : vector<32x1xf32> to vector<32x16xf32>
    %23 = arith.addf %20, %22 : vector<32x16xf32>
    %c0_17 = arith.constant 0 : index
    %c4 = arith.constant 4 : index
    %24 = vector.load %arg6[%c0_17, %c4] : memref<32x16xf32, #tpu.memory_space<vmem>>, vector<32x1xf32>
    %c0_18 = arith.constant 0 : index
    %c5 = arith.constant 5 : index
    %25 = vector.load %arg6[%c0_18, %c5] : memref<32x16xf32, #tpu.memory_space<vmem>>, vector<32x1xf32>
    %cst_19 = arith.constant 0.000000e+00 : f32
    %26 = vector.broadcast %cst_19 : f32 to vector<32x16xf32>
    %27 = arith.maximumf %23, %26 : vector<32x16xf32>
    %28 = vector.broadcast %24 : vector<32x1xf32> to vector<32x16xf32>
    %29 = arith.mulf %28, %27 : vector<32x16xf32>
    %30 = vector.broadcast %25 : vector<32x1xf32> to vector<32x16xf32>
    %31 = arith.addf %29, %30 : vector<32x16xf32>
    %cst_20 = arith.constant 0.000000e+00 : f32
    %32 = vector.broadcast %cst_20 : f32 to vector<32x16xf32>
    %33 = arith.maximumf %31, %32 : vector<32x16xf32>
    %c128 = arith.constant 128 : index
    %c0_21 = arith.constant 0 : index
    %34 = vector.load %arg3[%c128, %c0_21] : memref<176x32xf32, #tpu.memory_space<vmem>>, vector<32x32xf32>
    %cst_22 = arith.constant dense<0.000000e+00> : vector<32x16xf32>
    %35 = tpu.matmul %34, %33, %cst_22 {dimension_numbers = #tpu.dot_dimension_numbers<[1], [0], [0], [1], [0, 0, 1, 1], [], []>} : vector<32x32xf32>, vector<32x16xf32>, vector<32x16xf32> -> vector<32x16xf32>
    %c0_23 = arith.constant 0 : index
    %c0_24 = arith.constant 0 : index
    %36 = vector.load %arg4[%c0_23, %c0_24] : memref<40x16xf32, #tpu.memory_space<vmem>>, vector<32x16xf32>
    %cst_25 = arith.constant dense<0.000000e+00> : vector<32x16xf32>
    %37 = tpu.matmul %36, %1, %cst_25 {dimension_numbers = #tpu.dot_dimension_numbers<[1], [0], [0], [1], [0, 0, 1, 1], [], []>} : vector<32x16xf32>, vector<16x16xf32>, vector<32x16xf32> -> vector<32x16xf32>
    %38 = arith.addf %35, %37 : vector<32x16xf32>
    %c0_26 = arith.constant 0 : index
    %c6 = arith.constant 6 : index
    %39 = vector.load %arg6[%c0_26, %c6] : memref<32x16xf32, #tpu.memory_space<vmem>>, vector<32x1xf32>
    %40 = vector.broadcast %39 : vector<32x1xf32> to vector<32x16xf32>
    %41 = arith.addf %38, %40 : vector<32x16xf32>
    %c0_27 = arith.constant 0 : index
    %c7 = arith.constant 7 : index
    %42 = vector.load %arg6[%c0_27, %c7] : memref<32x16xf32, #tpu.memory_space<vmem>>, vector<32x1xf32>
    %c0_28 = arith.constant 0 : index
    %c8 = arith.constant 8 : index
    %43 = vector.load %arg6[%c0_28, %c8] : memref<32x16xf32, #tpu.memory_space<vmem>>, vector<32x1xf32>
    %cst_29 = arith.constant 0.000000e+00 : f32
    %44 = vector.broadcast %cst_29 : f32 to vector<32x16xf32>
    %45 = arith.maximumf %41, %44 : vector<32x16xf32>
    %46 = vector.broadcast %42 : vector<32x1xf32> to vector<32x16xf32>
    %47 = arith.mulf %46, %45 : vector<32x16xf32>
    %48 = vector.broadcast %43 : vector<32x1xf32> to vector<32x16xf32>
    %49 = arith.addf %47, %48 : vector<32x16xf32>
    %cst_30 = arith.constant 0.000000e+00 : f32
    %50 = vector.broadcast %cst_30 : f32 to vector<32x16xf32>
    %51 = arith.maximumf %49, %50 : vector<32x16xf32>
    %c160 = arith.constant 160 : index
    %c0_31 = arith.constant 0 : index
    %52 = vector.load %arg3[%c160, %c0_31] : memref<176x32xf32, #tpu.memory_space<vmem>>, vector<16x32xf32>
    %cst_32 = arith.constant dense<0.000000e+00> : vector<16x16xf32>
    %53 = tpu.matmul %52, %51, %cst_32 {dimension_numbers = #tpu.dot_dimension_numbers<[1], [0], [0], [1], [0, 0, 1, 1], [], []>} : vector<16x32xf32>, vector<32x16xf32>, vector<16x16xf32> -> vector<16x16xf32>
    %c0_33 = arith.constant 0 : index
    %c9 = arith.constant 9 : index
    %54 = vector.load %arg6[%c0_33, %c9] : memref<32x16xf32, #tpu.memory_space<vmem>>, vector<16x1xf32>
    %55 = vector.broadcast %54 : vector<16x1xf32> to vector<16x16xf32>
    %56 = arith.addf %53, %55 : vector<16x16xf32>
    %c0_34 = arith.constant 0 : index
    %c10 = arith.constant 10 : index
    %57 = vector.load %arg6[%c0_34, %c10] : memref<32x16xf32, #tpu.memory_space<vmem>>, vector<16x1xf32>
    %c0_35 = arith.constant 0 : index
    %c11 = arith.constant 11 : index
    %58 = vector.load %arg6[%c0_35, %c11] : memref<32x16xf32, #tpu.memory_space<vmem>>, vector<16x1xf32>
    %cst_36 = arith.constant 0.000000e+00 : f32
    %59 = vector.broadcast %cst_36 : f32 to vector<16x16xf32>
    %60 = arith.maximumf %56, %59 : vector<16x16xf32>
    %61 = vector.broadcast %57 : vector<16x1xf32> to vector<16x16xf32>
    %62 = arith.mulf %61, %60 : vector<16x16xf32>
    %63 = vector.broadcast %58 : vector<16x1xf32> to vector<16x16xf32>
    %64 = arith.addf %62, %63 : vector<16x16xf32>
    %cst_37 = arith.constant 0.000000e+00 : f32
    %65 = vector.broadcast %cst_37 : f32 to vector<16x16xf32>
    %66 = arith.maximumf %64, %65 : vector<16x16xf32>
    %c32_38 = arith.constant 32 : index
    %c0_39 = arith.constant 0 : index
    %67 = vector.load %arg4[%c32_38, %c0_39] : memref<40x16xf32, #tpu.memory_space<vmem>>, vector<8x16xf32>
    %cst_40 = arith.constant dense<0.000000e+00> : vector<8x16xf32>
    %68 = tpu.matmul %67, %66, %cst_40 {dimension_numbers = #tpu.dot_dimension_numbers<[1], [0], [0], [1], [0, 0, 1, 1], [], []>} : vector<8x16xf32>, vector<16x16xf32>, vector<8x16xf32> -> vector<8x16xf32>
    %c0_41 = arith.constant 0 : index
    %c12 = arith.constant 12 : index
    %69 = vector.load %arg6[%c0_41, %c12] : memref<32x16xf32, #tpu.memory_space<vmem>>, vector<8x1xf32>
    %70 = vector.broadcast %69 : vector<8x1xf32> to vector<8x16xf32>
    %71 = arith.addf %68, %70 : vector<8x16xf32>
    %c0_42 = arith.constant 0 : index
    %c13 = arith.constant 13 : index
    %72 = vector.load %arg6[%c0_42, %c13] : memref<32x16xf32, #tpu.memory_space<vmem>>, vector<8x1xf32>
    %c0_43 = arith.constant 0 : index
    %c14 = arith.constant 14 : index
    %73 = vector.load %arg6[%c0_43, %c14] : memref<32x16xf32, #tpu.memory_space<vmem>>, vector<8x1xf32>
    %cst_44 = arith.constant 0.000000e+00 : f32
    %74 = vector.broadcast %cst_44 : f32 to vector<8x16xf32>
    %75 = arith.maximumf %71, %74 : vector<8x16xf32>
    %76 = vector.broadcast %72 : vector<8x1xf32> to vector<8x16xf32>
    %77 = arith.mulf %76, %75 : vector<8x16xf32>
    %78 = vector.broadcast %73 : vector<8x1xf32> to vector<8x16xf32>
    %79 = arith.addf %77, %78 : vector<8x16xf32>
    %cst_45 = arith.constant 0.000000e+00 : f32
    %80 = vector.broadcast %cst_45 : f32 to vector<8x16xf32>
    %81 = arith.maximumf %79, %80 : vector<8x16xf32>
    %c0_46 = arith.constant 0 : index
    %c0_47 = arith.constant 0 : index
    %82 = vector.load %arg5[%c0_46, %c0_47] : memref<8x8xf32, #tpu.memory_space<vmem>>, vector<8x8xf32>
    %cst_48 = arith.constant dense<0.000000e+00> : vector<8x16xf32>
    %83 = tpu.matmul %82, %81, %cst_48 {dimension_numbers = #tpu.dot_dimension_numbers<[1], [0], [0], [1], [0, 0, 1, 1], [], []>} : vector<8x8xf32>, vector<8x16xf32>, vector<8x16xf32> -> vector<8x16xf32>
    %c0_49 = arith.constant 0 : index
    %c15 = arith.constant 15 : index
    %84 = vector.load %arg6[%c0_49, %c15] : memref<32x16xf32, #tpu.memory_space<vmem>>, vector<8x1xf32>
    %85 = vector.broadcast %84 : vector<8x1xf32> to vector<8x16xf32>
    %86 = arith.addf %83, %85 : vector<8x16xf32>
    %cst_50 = arith.constant 0.000000e+00 : f32
    %87 = vector.broadcast %cst_50 : f32 to vector<8x16xf32>
    %88 = arith.maximumf %86, %87 : vector<8x16xf32>
    %c0_51 = arith.constant 0 : index
    %c0_52 = arith.constant 0 : index
    %89 = vector.load %arg7[%c0_51, %c0_52] : memref<8x16xf32, #tpu.memory_space<vmem>>, vector<8x16xf32>
    tpu.vector_store %arg7[%c0_51, %c0_52], %88 {strides = array<i32>} : memref<8x16xf32, #tpu.memory_space<vmem>>, vector<8x16xf32>,
    return
  }
  func.func @transform_0(%arg0: i32) -> (i32, i32) {
    %c0_i32 = arith.constant 0 : i32
    %c0_i32_0 = arith.constant 0 : i32
    return %c0_i32, %arg0 : i32, i32
  }
  func.func @transform_1(%arg0: i32) -> (i32, i32) {
    %c0_i32 = arith.constant 0 : i32
    %c0_i32_0 = arith.constant 0 : i32
    return %c0_i32, %arg0 : i32, i32
  }
  func.func @transform_2(%arg0: i32) -> (i32, i32) {
    %c0_i32 = arith.constant 0 : i32
    %c0_i32_0 = arith.constant 0 : i32
    %c0_i32_1 = arith.constant 0 : i32
    return %c0_i32, %c0_i32_0 : i32, i32
  }
  func.func @transform_3(%arg0: i32) -> (i32, i32) {
    %c0_i32 = arith.constant 0 : i32
    %c0_i32_0 = arith.constant 0 : i32
    %c0_i32_1 = arith.constant 0 : i32
    return %c0_i32, %c0_i32_0 : i32, i32
  }
  func.func @transform_4(%arg0: i32) -> (i32, i32) {
    %c0_i32 = arith.constant 0 : i32
    %c0_i32_0 = arith.constant 0 : i32
    %c0_i32_1 = arith.constant 0 : i32
    return %c0_i32, %c0_i32_0 : i32, i32
  }
  func.func @transform_5(%arg0: i32) -> (i32, i32) {
    %c0_i32 = arith.constant 0 : i32
    %c0_i32_0 = arith.constant 0 : i32
    %c0_i32_1 = arith.constant 0 : i32
    return %c0_i32, %c0_i32_0 : i32, i32
  }
  func.func @transform_6(%arg0: i32) -> (i32, i32) {
    %c0_i32 = arith.constant 0 : i32
    %c0_i32_0 = arith.constant 0 : i32
    return %c0_i32, %arg0 : i32, i32
  }
}

</mosaic_0001>

<llo_original>
// kernel: model_attention_forward.1
$region0: #{model_attention_forward.1}
  #allocation0 [shape = 'u32[]', space=smem, size = 0x4, offset = 0x4, fixed_abs, tag = 'smem constant byte address 0x4 - core index']
  #allocation1 [shape = 'u32[144,128]{1,0:T(1,128)}', space=vmem, size = 0x12000, scoped, tag = 'internal scratch']
  %s0 = inlined_call_operand.vmem [shape: f32[32,16], index: 0, kind: input, shape index: {}]
  %s1 = inlined_call_operand.vmem [shape: f32[16,16], index: 1, kind: input, shape index: {}]
  %s2 = inlined_call_operand.vmem [shape: f32[176,32], index: 2, kind: input, shape index: {}]
  %s3 = inlined_call_operand.vmem [shape: f32[40,16], index: 3, kind: input, shape index: {}]
  %s4 = inlined_call_operand.vmem [shape: f32[8,8], index: 4, kind: input, shape index: {}]
  %s5 = inlined_call_operand.vmem [shape: f32[32,16], index: 5, kind: input, shape index: {}]
  %s6 = inlined_call_operand.hbm [shape: f32[8,16], index: 6, kind: output, shape index: {}]
  %s7 = sld [smem:[#allocation0]]
  $region34: #{model_attention_forward.1} parent=0
    _
  %s9 = ssub.s32 1, %s7
  %s10 = scalar_select 0, %s9, %s7
  $region1: #{model_attention_forward.1} parent=0
    #allocation2 [shape = 'u8[4096]{0}', space=vmem, size = 0x1000, scoped, tag = 'output window, operand 0, single buffered']
    #allocation3 [shape = 's32[1]{0}', space=sflag, size = 0x4, scoped, tag = 'scoped memory for model_attention_forward.1']
    %11 = vsyncpa [#allocation3], 0
    // Predicated region
    $region2: #{model_attention_forward.1} parent=1 // pred_check
      _
    $region3: #{model_attention_forward.1} parent=1 // pred_check_branch
      %13 = sbr.rel (0) target = $region5
    $region4: #{model_attention_forward.1} parent=1 // pred_region
      _
    $region5: #{model_attention_forward.1} parent=1 // pred_fallthru
      _
    // Predicated region
    $region6: #{model_attention_forward.1} parent=1 // pred_check
      _
    $region7: #{model_attention_forward.1} parent=1 // pred_check_branch
      %15 = sbr.rel (0) target = $region9
    $region8: #{model_attention_forward.1} parent=1 // pred_region
      _
    $region9: #{model_attention_forward.1} parent=1 // pred_fallthru
      _
    // Predicated region
    $region10: #{model_attention_forward.1} parent=1 // pred_check
      _
    $region11: #{model_attention_forward.1} parent=1 // pred_check_branch
      %17 = sbr.rel (0) target = $region13
    $region12: #{model_attention_forward.1} parent=1 // pred_region
      _
    $region13: #{model_attention_forward.1} parent=1 // pred_fallthru
      _
    // Predicated region
    $region14: #{model_attention_forward.1} parent=1 // pred_check
      _
    $region15: #{model_attention_forward.1} parent=1 // pred_check_branch
      %19 = sbr.rel (0) target = $region17
    $region16: #{model_attention_forward.1} parent=1 // pred_region
      _
    $region17: #{model_attention_forward.1} parent=1 // pred_fallthru
      _
    // Predicated region
    $region18: #{model_attention_forward.1} parent=1 // pred_check
      _
    $region19: #{model_attention_forward.1} parent=1 // pred_check_branch
      %21 = sbr.rel (0) target = $region21
    $region20: #{model_attention_forward.1} parent=1 // pred_region
      _
    $region21: #{model_attention_forward.1} parent=1 // pred_fallthru
      _
    // Predicated region
    $region22: #{model_attention_forward.1} parent=1 // pred_check
      _
    $region23: #{model_attention_forward.1} parent=1 // pred_check_branch
      %23 = sbr.rel (0) target = $region25
    $region24: #{model_attention_forward.1} parent=1 // pred_region
      _
    $region25: #{model_attention_forward.1} parent=1 // pred_fallthru
      _
    %v24 = vld [vmem:[%s0] sm:$0xff]
    %v25 = vld [vmem:[%s0 + $0x8] sm:$0xff]
    %v26 = vld [vmem:[%s0 + $0x10] sm:$0xff]
    %v27 = vld [vmem:[%s0 + $0x18] sm:$0xff]
    %v28 = vld [vmem:[%s1] sm:$0xff]
    %v29 = vld [vmem:[%s1 + $0x8] sm:$0xff]
    %v30 = vld [vmem:[%s2] sm:$0xff]
    %v31 = vld [vmem:[%s2 + $0x8] sm:$0xff]
    %v32 = vld [vmem:[%s2 + $0x10] sm:$0xff]
    %v33 = vld [vmem:[%s2 + $0x18] sm:$0xff]
    %v34 = vld [vmem:[%s5] sm:$0xff]
    %v35 = vld [vmem:[%s5 + $0x8] sm:$0xff]
    %v36 = vld [vmem:[%s5 + $0x10] sm:$0xff]
    %v37 = vld [vmem:[%s5 + $0x18] sm:$0xff]
    %39 = vset.pattern.permute.xlu0 0
    %40 = vperm.xlu0 %39, %v34
    %v41 = vpop.permute.xlu0 %40
    %44 = vset.pattern.permute.xlu0 0
    %45 = vperm.xlu0 %44, %v35
    %v46 = vpop.permute.xlu0 %45
    %49 = vset.pattern.permute.xlu0 0
    %50 = vperm.xlu0 %49, %v36
    %v51 = vpop.permute.xlu0 %50
    %54 = vset.pattern.permute.xlu0 0
    %55 = vperm.xlu0 %54, %v37
    %v56 = vpop.permute.xlu0 %55
    %vm58 = vcmask 261120
    %v60 = vsel %vm58, %v30, 0
    %v63 = vsel %vm58, %v31, 0
    %v66 = vsel %vm58, %v32, 0
    %v69 = vsel %vm58, %v33, 0
    %71 = vmatprep.subr.mxu0 0.0
    %72 = vmatpush1.msra.mxu0 0.0
    %73 = vmatprep.subr.mxu0 0.0
    %74 = vmatpush1.msra.mxu0 0.0
    %75 = vmatprep.subr.mxu0 0.0
    %76 = vmatpush1.msra.mxu0 0.0
    %77 = vmatprep.subr.mxu0 0.0
    %78 = vmatpush1.msra.mxu0 0.0
    %79 = vmatprep.subr.mxu0 0.0
    %80 = vmatpush1.msra.mxu0 0.0
    %81 = vmatprep.subr.mxu0 0.0
    %82 = vmatpush1.msra.mxu0 0.0
    %83 = vmatprep.subr.mxu0 0.0
    %84 = vmatpush1.msra.mxu0 0.0
    %85 = vmatprep.subr.mxu0 0.0
    %86 = vmatpush1.msra.mxu0 0.0
    %87 = vmatprep.subr.mxu0 0.0
    %88 = vmatpush1.msra.mxu0 0.0
    %89 = vmatprep.subr.mxu0 0.0
    %90 = vmatpush1.msra.mxu0 0.0
    %91 = vmatprep.subr.mxu0 0.0
    %92 = vmatpush1.msra.mxu0 0.0
    %93 = vmatprep.subr.mxu0 0.0
    %94 = vmatpush1.msra.mxu0 0.0
    %95 = vmatprep.subr.mxu0 0.0
    %96 = vmatpush1.msra.mxu0 %v27
    %97 = vmatprep.subr.mxu0 0.0
    %98 = vmatpush1.msra.mxu0 %v26
    %99 = vmatprep.subr.mxu0 0.0
    %100 = vmatpush1.msra.mxu0 %v25
    %101 = vmatprep.subr.mxu0 0.0
    %102 = vmatpush1.msra.mxu0 %v24
    %103 = vmatprep.subr.mxu0 0.0
    %104 = vmatpush2.msra.mxu0 0.0
    %105 = vmatprep.subr.mxu0 0.0
    %106 = vmatpush2.msra.mxu0 0.0
    %107 = vmatprep.subr.mxu0 0.0
    %108 = vmatpush2.msra.mxu0 0.0
    %109 = vmatprep.subr.mxu0 0.0
    %110 = vmatpush2.msra.mxu0 0.0
    %111 = vmatprep.subr.mxu0 0.0
    %112 = vmatpush2.msra.mxu0 0.0
    %113 = vmatprep.subr.mxu0 0.0
    %114 = vmatpush2.msra.mxu0 0.0
    %115 = vmatprep.subr.mxu0 0.0
    %116 = vmatpush2.msra.mxu0 0.0
    %117 = vmatprep.subr.mxu0 0.0
    %118 = vmatpush2.msra.mxu0 0.0
    %119 = vmatprep.subr.mxu0 0.0
    %120 = vmatpush2.msra.mxu0 0.0
    %121 = vmatprep.subr.mxu0 0.0
    %122 = vmatpush2.msra.mxu0 0.0
    %123 = vmatprep.subr.mxu0 0.0
    %124 = vmatpush2.msra.mxu0 0.0
    %125 = vmatprep.subr.mxu0 0.0
    %126 = vmatpush2.msra.mxu0 0.0
    %127 = vmatprep.subr.mxu0 0.0
    %128 = vmatpush2.msra.mxu0 0.0
    %129 = vmatprep.subr.mxu0 0.0
    %130 = vmatpush2.msra.mxu0 0.0
    %131 = vmatprep.subr.mxu0 0.0
    %132 = vmatpush2.msra.mxu0 0.0
    %133 = vmatprep.subr.mxu0 0.0
    %134 = vmatpush2.msra.mxu0 0.0
    %135 = vmatprep.mubr.f32.mxu0 0.0
    %136 = vmatmul.mubr.f32.gmra.mxu0 %v60
    %v137 = vpop.f32.mrf.mxu0
    %v138 = vadd.f32 %v41, %v137
    %v139 = vpop.f32.mrf.mxu0
    %140 = vmatprep.mubr.f32.mxu0 0.0
    %141 = vmatmul.mubr.f32.gmra.mxu0 %v63
    %v142 = vpop.f32.mrf.mxu0
    %v143 = vadd.f32 %v46, %v142
    %v144 = vpop.f32.mrf.mxu0
    %145 = vmatprep.mubr.f32.mxu0 0.0
    %146 = vmatmul.mubr.f32.gmra.mxu0 %v66
    %v147 = vpop.f32.mrf.mxu0
    %v148 = vadd.f32 %v51, %v147
    %v149 = vpop.f32.mrf.mxu0
    %150 = vmatprep.mubr.f32.mxu0 0.0
    %151 = vmatmul.mubr.f32.gmra.mxu0 %v69
    %v152 = vpop.f32.mrf.mxu0
    %v153 = vadd.f32 %v56, %v152
    %v154 = vpop.f32.mrf.mxu0
    %155 = vdwg.mxu0
    %v156 = vmax.f32 %v138, 0.0
    %v157 = vmax.f32 %v143, 0.0
    %v158 = vmax.f32 %v148, 0.0
    %v159 = vmax.f32 %v153, 0.0
    %v160 = vld [vmem:[%s2 + $0x20] sm:$0xff]
    %v161 = vld [vmem:[%s2 + $0x28] sm:$0xff]
    %v162 = vld [vmem:[%s2 + $0x30] sm:$0xff]
    %v163 = vld [vmem:[%s2 + $0x38] sm:$0xff]
    %164 = vset.pattern.permute.xlu0 1
    %165 = vperm.xlu0 %164, %v34
    %v166 = vpop.permute.xlu0 %165
    %168 = vset.pattern.permute.xlu0 1
    %169 = vperm.xlu0 %168, %v35
    %v170 = vpop.permute.xlu0 %169
    %172 = vset.pattern.permute.xlu0 1
    %173 = vperm.xlu0 %172, %v36
    %v174 = vpop.permute.xlu0 %173
    %176 = vset.pattern.permute.xlu0 1
    %177 = vperm.xlu0 %176, %v37
    %v178 = vpop.permute.xlu0 %177
    %v181 = vsel %vm58, %v160, 0
    %v184 = vsel %vm58, %v161, 0
    %v187 = vsel %vm58, %v162, 0
    %v190 = vsel %vm58, %v163, 0
    %192 = vmatprep.subr.mxu0 0.0
    %193 = vmatpush1.msra.mxu0 0.0
    %194 = vmatprep.subr.mxu0 0.0
    %195 = vmatpush1.msra.mxu0 0.0
    %196 = vmatprep.subr.mxu0 0.0
    %197 = vmatpush1.msra.mxu0 0.0
    %198 = vmatprep.subr.mxu0 0.0
    %199 = vmatpush1.msra.mxu0 0.0
    %200 = vmatprep.subr.mxu0 0.0
    %201 = vmatpush1.msra.mxu0 0.0
    %202 = vmatprep.subr.mxu0 0.0
    %203 = vmatpush1.msra.mxu0 0.0
    %204 = vmatprep.subr.mxu0 0.0
    %205 = vmatpush1.msra.mxu0 0.0
    %206 = vmatprep.subr.mxu0 0.0
    %207 = vmatpush1.msra.mxu0 0.0
    %208 = vmatprep.subr.mxu0 0.0
    %209 = vmatpush1.msra.mxu0 0.0
    %210 = vmatprep.subr.mxu0 0.0
    %211 = vmatpush1.msra.mxu0 0.0
    %212 = vmatprep.subr.mxu0 0.0
    %213 = vmatpush1.msra.mxu0 0.0
    %214 = vmatprep.subr.mxu0 0.0
    %215 = vmatpush1.msra.mxu0 0.0
    %216 = vmatprep.subr.mxu0 0.0
    %217 = vmatpush1.msra.mxu0 %v159
    %218 = vmatprep.subr.mxu0 0.0
    %219 = vmatpush1.msra.mxu0 %v158
    %220 = vmatprep.subr.mxu0 0.0
    %221 = vmatpush1.msra.mxu0 %v157
    %222 = vmatprep.subr.mxu0 0.0
    %223 = vmatpush1.msra.mxu0 %v156
    %224 = vmatprep.subr.mxu0 0.0
    %225 = vmatpush2.msra.mxu0 0.0
    %226 = vmatprep.subr.mxu0 0.0
    %227 = vmatpush2.msra.mxu0 0.0
    %228 = vmatprep.subr.mxu0 0.0
    %229 = vmatpush2.msra.mxu0 0.0
    %230 = vmatprep.subr.mxu0 0.0
    %231 = vmatpush2.msra.mxu0 0.0
    %232 = vmatprep.subr.mxu0 0.0
    %233 = vmatpush2.msra.mxu0 0.0
    %234 = vmatprep.subr.mxu0 0.0
    %235 = vmatpush2.msra.mxu0 0.0
    %236 = vmatprep.subr.mxu0 0.0
    %237 = vmatpush2.msra.mxu0 0.0
    %238 = vmatprep.subr.mxu0 0.0
    %239 = vmatpush2.msra.mxu0 0.0
    %240 = vmatprep.subr.mxu0 0.0
    %241 = vmatpush2.msra.mxu0 0.0
    %242 = vmatprep.subr.mxu0 0.0
    %243 = vmatpush2.msra.mxu0 0.0
    %244 = vmatprep.subr.mxu0 0.0
    %245 = vmatpush2.msra.mxu0 0.0
    %246 = vmatprep.subr.mxu0 0.0
    %247 = vmatpush2.msra.mxu0 0.0
    %248 = vmatprep.subr.mxu0 0.0
    %249 = vmatpush2.msra.mxu0 0.0
    %250 = vmatprep.subr.mxu0 0.0
    %251 = vmatpush2.msra.mxu0 0.0
    %252 = vmatprep.subr.mxu0 0.0
    %253 = vmatpush2.msra.mxu0 0.0
    %254 = vmatprep.subr.mxu0 0.0
    %255 = vmatpush2.msra.mxu0 0.0
    %256 = vmatprep.mubr.f32.mxu0 0.0
    %257 = vmatmul.mubr.f32.gmra.mxu0 %v181
    %v258 = vpop.f32.mrf.mxu0
    %v259 = vadd.f32 %v166, %v258
    %v260 = vpop.f32.mrf.mxu0
    %261 = vmatprep.mubr.f32.mxu0 0.0
    %262 = vmatmul.mubr.f32.gmra.mxu0 %v184
    %v263 = vpop.f32.mrf.mxu0
    %v264 = vadd.f32 %v170, %v263
    %v265 = vpop.f32.mrf.mxu0
    %266 = vmatprep.mubr.f32.mxu0 0.0
    %267 = vmatmul.mubr.f32.gmra.mxu0 %v187
    %v268 = vpop.f32.mrf.mxu0
    %v269 = vadd.f32 %v174, %v268
    %v270 = vpop.f32.mrf.mxu0
    %271 = vmatprep.mubr.f32.mxu0 0.0
    %272 = vmatmul.mubr.f32.gmra.mxu0 %v190
    %v273 = vpop.f32.mrf.mxu0
    %v274 = vadd.f32 %v178, %v273
    %v275 = vpop.f32.mrf.mxu0
    %276 = vdwg.mxu0
    %v277 = vld [vmem:[%s2 + $0x40] sm:$0xff]
    %v278 = vld [vmem:[%s2 + $0x48] sm:$0xff]
    %v279 = vld [vmem:[%s2 + $0x50] sm:$0xff]
    %v280 = vld [vmem:[%s2 + $0x58] sm:$0xff]
    %281 = vset.pattern.permute.xlu0 2
    %282 = vperm.xlu0 %281, %v34
    %v283 = vpop.permute.xlu0 %282
    %285 = vset.pattern.permute.xlu0 2
    %286 = vperm.xlu0 %285, %v35
    %v287 = vpop.permute.xlu0 %286
    %289 = vset.pattern.permute.xlu0 2
    %290 = vperm.xlu0 %289, %v36
    %v291 = vpop.permute.xlu0 %290
    %293 = vset.pattern.permute.xlu0 2
    %294 = vperm.xlu0 %293, %v37
    %v295 = vpop.permute.xlu0 %294
    %v298 = vsel %vm58, %v277, 0
    %v301 = vsel %vm58, %v278, 0
    %v304 = vsel %vm58, %v279, 0
    %v307 = vsel %vm58, %v280, 0
    %309 = vmatprep.subr.mxu0 0.0
    %310 = vmatpush1.msra.mxu0 0.0
    %311 = vmatprep.subr.mxu0 0.0
    %312 = vmatpush1.msra.mxu0 0.0
    %313 = vmatprep.subr.mxu0 0.0
    %314 = vmatpush1.msra.mxu0 0.0
    %315 = vmatprep.subr.mxu0 0.0
    %316 = vmatpush1.msra.mxu0 0.0
    %317 = vmatprep.subr.mxu0 0.0
    %318 = vmatpush1.msra.mxu0 0.0
    %319 = vmatprep.subr.mxu0 0.0
    %320 = vmatpush1.msra.mxu0 0.0
    %321 = vmatprep.subr.mxu0 0.0
    %322 = vmatpush1.msra.mxu0 0.0
    %323 = vmatprep.subr.mxu0 0.0
    %324 = vmatpush1.msra.mxu0 0.0
    %325 = vmatprep.subr.mxu0 0.0
    %326 = vmatpush1.msra.mxu0 0.0
    %327 = vmatprep.subr.mxu0 0.0
    %328 = vmatpush1.msra.mxu0 0.0
    %329 = vmatprep.subr.mxu0 0.0
    %330 = vmatpush1.msra.mxu0 0.0
    %331 = vmatprep.subr.mxu0 0.0
    %332 = vmatpush1.msra.mxu0 0.0
    %333 = vmatprep.subr.mxu0 0.0
    %334 = vmatpush1.msra.mxu0 %v274
    %335 = vmatprep.subr.mxu0 0.0
    %336 = vmatpush1.msra.mxu0 %v269
    %337 = vmatprep.subr.mxu0 0.0
    %338 = vmatpush1.msra.mxu0 %v264
    %339 = vmatprep.subr.mxu0 0.0
    %340 = vmatpush1.msra.mxu0 %v259
    %341 = vmatprep.subr.mxu0 0.0
    %342 = vmatpush2.msra.mxu0 0.0
    %343 = vmatprep.subr.mxu0 0.0
    %344 = vmatpush2.msra.mxu0 0.0
    %345 = vmatprep.subr.mxu0 0.0
    %346 = vmatpush2.msra.mxu0 0.0
    %347 = vmatprep.subr.mxu0 0.0
    %348 = vmatpush2.msra.mxu0 0.0
    %349 = vmatprep.subr.mxu0 0.0
    %350 = vmatpush2.msra.mxu0 0.0
    %351 = vmatprep.subr.mxu0 0.0
    %352 = vmatpush2.msra.mxu0 0.0
    %353 = vmatprep.subr.mxu0 0.0
    %354 = vmatpush2.msra.mxu0 0.0
    %355 = vmatprep.subr.mxu0 0.0
    %356 = vmatpush2.msra.mxu0 0.0
    %357 = vmatprep.subr.mxu0 0.0
    %358 = vmatpush2.msra.mxu0 0.0
    %359 = vmatprep.subr.mxu0 0.0
    %360 = vmatpush2.msra.mxu0 0.0
    %361 = vmatprep.subr.mxu0 0.0
    %362 = vmatpush2.msra.mxu0 0.0
    %363 = vmatprep.subr.mxu0 0.0
    %364 = vmatpush2.msra.mxu0 0.0
    %365 = vmatprep.subr.mxu0 0.0
    %366 = vmatpush2.msra.mxu0 0.0
    %367 = vmatprep.subr.mxu0 0.0
    %368 = vmatpush2.msra.mxu0 0.0
    %369 = vmatprep.subr.mxu0 0.0
    %370 = vmatpush2.msra.mxu0 0.0
    %371 = vmatprep.subr.mxu0 0.0
    %372 = vmatpush2.msra.mxu0 0.0
    %373 = vmatprep.mubr.f32.mxu0 0.0
    %374 = vmatmul.mubr.f32.gmra.mxu0 %v298
    %v375 = vpop.f32.mrf.mxu0
    %v376 = vadd.f32 %v283, %v375
    %v377 = vpop.f32.mrf.mxu0
    %378 = vmatprep.mubr.f32.mxu0 0.0
    %379 = vmatmul.mubr.f32.gmra.mxu0 %v301
    %v380 = vpop.f32.mrf.mxu0
    %v381 = vadd.f32 %v287, %v380
    %v382 = vpop.f32.mrf.mxu0
    %383 = vmatprep.mubr.f32.mxu0 0.0
    %384 = vmatmul.mubr.f32.gmra.mxu0 %v304
    %v385 = vpop.f32.mrf.mxu0
    %v386 = vadd.f32 %v291, %v385
    %v387 = vpop.f32.mrf.mxu0
    %388 = vmatprep.mubr.f32.mxu0 0.0
    %389 = vmatmul.mubr.f32.gmra.mxu0 %v307
    %v390 = vpop.f32.mrf.mxu0
    %v391 = vadd.f32 %v295, %v390
    %v392 = vpop.f32.mrf.mxu0
    %393 = vdwg.mxu0
    %v394 = vld [vmem:[%s2 + $0x60] sm:$0xff]
    %v395 = vld [vmem:[%s2 + $0x68] sm:$0xff]
    %v396 = vld [vmem:[%s2 + $0x70] sm:$0xff]
    %v397 = vld [vmem:[%s2 + $0x78] sm:$0xff]
    %398 = vset.pattern.permute.xlu0 3
    %399 = vperm.xlu0 %398, %v34
    %v400 = vpop.permute.xlu0 %399
    %402 = vset.pattern.permute.xlu0 3
    %403 = vperm.xlu0 %402, %v35
    %v404 = vpop.permute.xlu0 %403
    %406 = vset.pattern.permute.xlu0 3
    %407 = vperm.xlu0 %406, %v36
    %v408 = vpop.permute.xlu0 %407
    %410 = vset.pattern.permute.xlu0 3
    %411 = vperm.xlu0 %410, %v37
    %v412 = vpop.permute.xlu0 %411
    %v415 = vsel %vm58, %v394, 0
    %v418 = vsel %vm58, %v395, 0
    %v421 = vsel %vm58, %v396, 0
    %v424 = vsel %vm58, %v397, 0
    %426 = vmatprep.subr.mxu0 0.0
    %427 = vmatpush1.msra.mxu0 0.0
    %428 = vmatprep.subr.mxu0 0.0
    %429 = vmatpush1.msra.mxu0 0.0
    %430 = vmatprep.subr.mxu0 0.0
    %431 = vmatpush1.msra.mxu0 0.0
    %432 = vmatprep.subr.mxu0 0.0
    %433 = vmatpush1.msra.mxu0 0.0
    %434 = vmatprep.subr.mxu0 0.0
    %435 = vmatpush1.msra.mxu0 0.0
    %436 = vmatprep.subr.mxu0 0.0
    %437 = vmatpush1.msra.mxu0 0.0
    %438 = vmatprep.subr.mxu0 0.0
    %439 = vmatpush1.msra.mxu0 0.0
    %440 = vmatprep.subr.mxu0 0.0
    %441 = vmatpush1.msra.mxu0 0.0
    %442 = vmatprep.subr.mxu0 0.0
    %443 = vmatpush1.msra.mxu0 0.0
    %444 = vmatprep.subr.mxu0 0.0
    %445 = vmatpush1.msra.mxu0 0.0
    %446 = vmatprep.subr.mxu0 0.0
    %447 = vmatpush1.msra.mxu0 0.0
    %448 = vmatprep.subr.mxu0 0.0
    %449 = vmatpush1.msra.mxu0 0.0
    %450 = vmatprep.subr.mxu0 0.0
    %451 = vmatpush1.msra.mxu0 %v391
    %452 = vmatprep.subr.mxu0 0.0
    %453 = vmatpush1.msra.mxu0 %v386
    %454 = vmatprep.subr.mxu0 0.0
    %455 = vmatpush1.msra.mxu0 %v381
    %456 = vmatprep.subr.mxu0 0.0
    %457 = vmatpush1.msra.mxu0 %v376
    %458 = vmatprep.subr.mxu0 0.0
    %459 = vmatpush2.msra.mxu0 0.0
    %460 = vmatprep.subr.mxu0 0.0
    %461 = vmatpush2.msra.mxu0 0.0
    %462 = vmatprep.subr.mxu0 0.0
    %463 = vmatpush2.msra.mxu0 0.0
    %464 = vmatprep.subr.mxu0 0.0
    %465 = vmatpush2.msra.mxu0 0.0
    %466 = vmatprep.subr.mxu0 0.0
    %467 = vmatpush2.msra.mxu0 0.0
    %468 = vmatprep.subr.mxu0 0.0
    %469 = vmatpush2.msra.mxu0 0.0
    %470 = vmatprep.subr.mxu0 0.0
    %471 = vmatpush2.msra.mxu0 0.0
    %472 = vmatprep.subr.mxu0 0.0
    %473 = vmatpush2.msra.mxu0 0.0
    %474 = vmatprep.subr.mxu0 0.0
    %475 = vmatpush2.msra.mxu0 0.0
    %476 = vmatprep.subr.mxu0 0.0
    %477 = vmatpush2.msra.mxu0 0.0
    %478 = vmatprep.subr.mxu0 0.0
    %479 = vmatpush2.msra.mxu0 0.0
    %480 = vmatprep.subr.mxu0 0.0
    %481 = vmatpush2.msra.mxu0 0.0
    %482 = vmatprep.subr.mxu0 0.0
    %483 = vmatpush2.msra.mxu0 0.0
    %484 = vmatprep.subr.mxu0 0.0
    %485 = vmatpush2.msra.mxu0 0.0
    %486 = vmatprep.subr.mxu0 0.0
    %487 = vmatpush2.msra.mxu0 0.0
    %488 = vmatprep.subr.mxu0 0.0
    %489 = vmatpush2.msra.mxu0 0.0
    %490 = vmatprep.mubr.f32.mxu0 0.0
    %491 = vmatmul.mubr.f32.gmra.mxu0 %v415
    %v492 = vpop.f32.mrf.mxu0
    %v493 = vadd.f32 %v400, %v492
    %v494 = vpop.f32.mrf.mxu0
    %495 = vmatprep.mubr.f32.mxu0 0.0
    %496 = vmatmul.mubr.f32.gmra.mxu0 %v418
    %v497 = vpop.f32.mrf.mxu0
    %v498 = vadd.f32 %v404, %v497
    %v499 = vpop.f32.mrf.mxu0
    %500 = vmatprep.mubr.f32.mxu0 0.0
    %501 = vmatmul.mubr.f32.gmra.mxu0 %v421
    %v502 = vpop.f32.mrf.mxu0
    %v503 = vadd.f32 %v408, %v502
    %v504 = vpop.f32.mrf.mxu0
    %505 = vmatprep.mubr.f32.mxu0 0.0
    %506 = vmatmul.mubr.f32.gmra.mxu0 %v424
    %v507 = vpop.f32.mrf.mxu0
    %v508 = vadd.f32 %v412, %v507
    %v509 = vpop.f32.mrf.mxu0
    %510 = vdwg.mxu0
    %v511 = vmax.f32 %v493, 0.0
    %v512 = vmax.f32 %v498, 0.0
    %v513 = vmax.f32 %v503, 0.0
    %v514 = vmax.f32 %v508, 0.0
    %515 = vset.pattern.permute.xlu0 4
    %516 = vperm.xlu0 %515, %v34
    %v517 = vpop.permute.xlu0 %516
    %519 = vset.pattern.permute.xlu0 4
    %520 = vperm.xlu0 %519, %v35
    %v521 = vpop.permute.xlu0 %520
    %523 = vset.pattern.permute.xlu0 4
    %524 = vperm.xlu0 %523, %v36
    %v525 = vpop.permute.xlu0 %524
    %527 = vset.pattern.permute.xlu0 4
    %528 = vperm.xlu0 %527, %v37
    %v529 = vpop.permute.xlu0 %528
    %v531 = vmul.f32 %v517, %v511
    %v532 = vmul.f32 %v521, %v512
    %v533 = vmul.f32 %v525, %v513
    %v534 = vmul.f32 %v529, %v514
    %535 = vset.pattern.permute.xlu0 5
    %536 = vperm.xlu0 %535, %v34
    %v537 = vpop.permute.xlu0 %536
    %539 = vset.pattern.permute.xlu0 5
    %540 = vperm.xlu0 %539, %v35
    %v541 = vpop.permute.xlu0 %540
    %543 = vset.pattern.permute.xlu0 5
    %544 = vperm.xlu0 %543, %v36
    %v545 = vpop.permute.xlu0 %544
    %547 = vset.pattern.permute.xlu0 5
    %548 = vperm.xlu0 %547, %v37
    %v549 = vpop.permute.xlu0 %548
    %v551 = vadd.f32 %v531, %v537
    %v552 = vadd.f32 %v532, %v541
    %v553 = vadd.f32 %v533, %v545
    %v554 = vadd.f32 %v534, %v549
    %v555 = vmax.f32 %v551, 0.0
    %v556 = vmax.f32 %v552, 0.0
    %v557 = vmax.f32 %v553, 0.0
    %v558 = vmax.f32 %v554, 0.0
    %v559 = vld [vmem:[%s2 + $0x80] sm:$0xff]
    %v560 = vld [vmem:[%s2 + $0x88] sm:$0xff]
    %v561 = vld [vmem:[%s2 + $0x90] sm:$0xff]
    %v562 = vld [vmem:[%s2 + $0x98] sm:$0xff]
    %v563 = vld [vmem:[%s3] sm:$0xff]
    %v564 = vld [vmem:[%s3 + $0x8] sm:$0xff]
    %v565 = vld [vmem:[%s3 + $0x10] sm:$0xff]
    %v566 = vld [vmem:[%s3 + $0x18] sm:$0xff]
    %vm567 = vcmask 130048
    %v569 = vsel %vm567, %v563, 0
    %v572 = vsel %vm567, %v564, 0
    %v575 = vsel %vm567, %v565, 0
    %v578 = vsel %vm567, %v566, 0
    %580 = vmatprep.subr.mxu0 0.0
    %581 = vmatpush1.msra.mxu0 0.0
    %582 = vmatprep.subr.mxu0 0.0
    %583 = vmatpush1.msra.mxu0 0.0
    %584 = vmatprep.subr.mxu0 0.0
    %585 = vmatpush1.msra.mxu0 0.0
    %586 = vmatprep.subr.mxu0 0.0
    %587 = vmatpush1.msra.mxu0 0.0
    %588 = vmatprep.subr.mxu0 0.0
    %589 = vmatpush1.msra.mxu0 0.0
    %590 = vmatprep.subr.mxu0 0.0
    %591 = vmatpush1.msra.mxu0 0.0
    %592 = vmatprep.subr.mxu0 0.0
    %593 = vmatpush1.msra.mxu0 0.0
    %594 = vmatprep.subr.mxu0 0.0
    %595 = vmatpush1.msra.mxu0 0.0
    %596 = vmatprep.subr.mxu0 0.0
    %597 = vmatpush1.msra.mxu0 0.0
    %598 = vmatprep.subr.mxu0 0.0
    %599 = vmatpush1.msra.mxu0 0.0
    %600 = vmatprep.subr.mxu0 0.0
    %601 = vmatpush1.msra.mxu0 0.0
    %602 = vmatprep.subr.mxu0 0.0
    %603 = vmatpush1.msra.mxu0 0.0
    %604 = vmatprep.subr.mxu0 0.0
    %605 = vmatpush1.msra.mxu0 0.0
    %606 = vmatprep.subr.mxu0 0.0
    %607 = vmatpush1.msra.mxu0 0.0
    %608 = vmatprep.subr.mxu0 0.0
    %609 = vmatpush1.msra.mxu0 %v29
    %610 = vmatprep.subr.mxu0 0.0
    %611 = vmatpush1.msra.mxu0 %v28
    %612 = vmatprep.subr.mxu0 0.0
    %613 = vmatpush2.msra.mxu0 0.0
    %614 = vmatprep.subr.mxu0 0.0
    %615 = vmatpush2.msra.mxu0 0.0
    %616 = vmatprep.subr.mxu0 0.0
    %617 = vmatpush2.msra.mxu0 0.0
    %618 = vmatprep.subr.mxu0 0.0
    %619 = vmatpush2.msra.mxu0 0.0
    %620 = vmatprep.subr.mxu0 0.0
    %621 = vmatpush2.msra.mxu0 0.0
    %622 = vmatprep.subr.mxu0 0.0
    %623 = vmatpush2.msra.mxu0 0.0
    %624 = vmatprep.subr.mxu0 0.0
    %625 = vmatpush2.msra.mxu0 0.0
    %626 = vmatprep.subr.mxu0 0.0
    %627 = vmatpush2.msra.mxu0 0.0
    %628 = vmatprep.subr.mxu0 0.0
    %629 = vmatpush2.msra.mxu0 0.0
    %630 = vmatprep.subr.mxu0 0.0
    %631 = vmatpush2.msra.mxu0 0.0
    %632 = vmatprep.subr.mxu0 0.0
    %633 = vmatpush2.msra.mxu0 0.0
    %634 = vmatprep.subr.mxu0 0.0
    %635 = vmatpush2.msra.mxu0 0.0
    %636 = vmatprep.subr.mxu0 0.0
    %637 = vmatpush2.msra.mxu0 0.0
    %638 = vmatprep.subr.mxu0 0.0
    %639 = vmatpush2.msra.mxu0 0.0
    %640 = vmatprep.subr.mxu0 0.0
    %641 = vmatpush2.msra.mxu0 0.0
    %642 = vmatprep.subr.mxu0 0.0
    %643 = vmatpush2.msra.mxu0 0.0
    %644 = vmatprep.mubr.f32.mxu0 0.0
    %645 = vmatmul.mubr.f32.gmra.mxu0 %v569
    %v646 = vpop.f32.mrf.mxu0
    %v647 = vadd.f32 0.0, %v646
    %v648 = vpop.f32.mrf.mxu0
    %649 = vmatprep.mubr.f32.mxu0 0.0
    %650 = vmatmul.mubr.f32.gmra.mxu0 %v572
    %v651 = vpop.f32.mrf.mxu0
    %v652 = vadd.f32 0.0, %v651
    %v653 = vpop.f32.mrf.mxu0
    %654 = vmatprep.mubr.f32.mxu0 0.0
    %655 = vmatmul.mubr.f32.gmra.mxu0 %v575
    %v656 = vpop.f32.mrf.mxu0
    %v657 = vadd.f32 0.0, %v656
    %v658 = vpop.f32.mrf.mxu0
    %659 = vmatprep.mubr.f32.mxu0 0.0
    %660 = vmatmul.mubr.f32.gmra.mxu0 %v578
    %v661 = vpop.f32.mrf.mxu0
    %v662 = vadd.f32 0.0, %v661
    %v663 = vpop.f32.mrf.mxu0
    %664 = vdwg.mxu0
    %v666 = vsel %vm58, %v559, 0
    %v669 = vsel %vm58, %v560, 0
    %v672 = vsel %vm58, %v561, 0
    %v675 = vsel %vm58, %v562, 0
    %677 = vmatprep.subr.mxu0 0.0
    %678 = vmatpush1.msra.mxu0 0.0
    %679 = vmatprep.subr.mxu0 0.0
    %680 = vmatpush1.msra.mxu0 0.0
    %681 = vmatprep.subr.mxu0 0.0
    %682 = vmatpush1.msra.mxu0 0.0
    %683 = vmatprep.subr.mxu0 0.0
    %684 = vmatpush1.msra.mxu0 0.0
    %685 = vmatprep.subr.mxu0 0.0
    %686 = vmatpush1.msra.mxu0 0.0
    %687 = vmatprep.subr.mxu0 0.0
    %688 = vmatpush1.msra.mxu0 0.0
    %689 = vmatprep.subr.mxu0 0.0
    %690 = vmatpush1.msra.mxu0 0.0
    %691 = vmatprep.subr.mxu0 0.0
    %692 = vmatpush1.msra.mxu0 0.0
    %693 = vmatprep.subr.mxu0 0.0
    %694 = vmatpush1.msra.mxu0 0.0
    %695 = vmatprep.subr.mxu0 0.0
    %696 = vmatpush1.msra.mxu0 0.0
    %697 = vmatprep.subr.mxu0 0.0
    %698 = vmatpush1.msra.mxu0 0.0
    %699 = vmatprep.subr.mxu0 0.0
    %700 = vmatpush1.msra.mxu0 0.0
    %701 = vmatprep.subr.mxu0 0.0
    %702 = vmatpush1.msra.mxu0 %v558
    %703 = vmatprep.subr.mxu0 0.0
    %704 = vmatpush1.msra.mxu0 %v557
    %705 = vmatprep.subr.mxu0 0.0
    %706 = vmatpush1.msra.mxu0 %v556
    %707 = vmatprep.subr.mxu0 0.0
    %708 = vmatpush1.msra.mxu0 %v555
    %709 = vmatprep.subr.mxu0 0.0
    %710 = vmatpush2.msra.mxu0 0.0
    %711 = vmatprep.subr.mxu0 0.0
    %712 = vmatpush2.msra.mxu0 0.0
    %713 = vmatprep.subr.mxu0 0.0
    %714 = vmatpush2.msra.mxu0 0.0
    %715 = vmatprep.subr.mxu0 0.0
    %716 = vmatpush2.msra.mxu0 0.0
    %717 = vmatprep.subr.mxu0 0.0
    %718 = vmatpush2.msra.mxu0 0.0
    %719 = vmatprep.subr.mxu0 0.0
    %720 = vmatpush2.msra.mxu0 0.0
    %721 = vmatprep.subr.mxu0 0.0
    %722 = vmatpush2.msra.mxu0 0.0
    %723 = vmatprep.subr.mxu0 0.0
    %724 = vmatpush2.msra.mxu0 0.0
    %725 = vmatprep.subr.mxu0 0.0
    %726 = vmatpush2.msra.mxu0 0.0
    %727 = vmatprep.subr.mxu0 0.0
    %728 = vmatpush2.msra.mxu0 0.0
    %729 = vmatprep.subr.mxu0 0.0
    %730 = vmatpush2.msra.mxu0 0.0
    %731 = vmatprep.subr.mxu0 0.0
    %732 = vmatpush2.msra.mxu0 0.0
    %733 = vmatprep.subr.mxu0 0.0
    %734 = vmatpush2.msra.mxu0 0.0
    %735 = vmatprep.subr.mxu0 0.0
    %736 = vmatpush2.msra.mxu0 0.0
    %737 = vmatprep.subr.mxu0 0.0
    %738 = vmatpush2.msra.mxu0 0.0
    %739 = vmatprep.subr.mxu0 0.0
    %740 = vmatpush2.msra.mxu0 0.0
    %741 = vmatprep.mubr.f32.mxu0 0.0
    %742 = vmatmul.mubr.f32.gmra.mxu0 %v666
    %v743 = vpop.f32.mrf.mxu0
    %v744 = vadd.f32 %v647, %v743
    %v745 = vpop.f32.mrf.mxu0
    %746 = vmatprep.mubr.f32.mxu0 0.0
    %747 = vmatmul.mubr.f32.gmra.mxu0 %v669
    %v748 = vpop.f32.mrf.mxu0
    %v749 = vadd.f32 %v652, %v748
    %v750 = vpop.f32.mrf.mxu0
    %751 = vmatprep.mubr.f32.mxu0 0.0
    %752 = vmatmul.mubr.f32.gmra.mxu0 %v672
    %v753 = vpop.f32.mrf.mxu0
    %v754 = vadd.f32 %v657, %v753
    %v755 = vpop.f32.mrf.mxu0
    %756 = vmatprep.mubr.f32.mxu0 0.0
    %757 = vmatmul.mubr.f32.gmra.mxu0 %v675
    %v758 = vpop.f32.mrf.mxu0
    %v759 = vadd.f32 %v662, %v758
    %v760 = vpop.f32.mrf.mxu0
    %761 = vdwg.mxu0
    %762 = vset.pattern.permute.xlu0 6
    %763 = vperm.xlu0 %762, %v34
    %v764 = vpop.permute.xlu0 %763
    %766 = vset.pattern.permute.xlu0 6
    %767 = vperm.xlu0 %766, %v35
    %v768 = vpop.permute.xlu0 %767
    %770 = vset.pattern.permute.xlu0 6
    %771 = vperm.xlu0 %770, %v36
    %v772 = vpop.permute.xlu0 %771
    %774 = vset.pattern.permute.xlu0 6
    %775 = vperm.xlu0 %774, %v37
    %v776 = vpop.permute.xlu0 %775
    %v778 = vadd.f32 %v744, %v764
    %v779 = vadd.f32 %v749, %v768
    %v780 = vadd.f32 %v754, %v772
    %v781 = vadd.f32 %v759, %v776
    %v782 = vmax.f32 %v778, 0.0
    %v783 = vmax.f32 %v779, 0.0
    %v784 = vmax.f32 %v780, 0.0
    %v785 = vmax.f32 %v781, 0.0
    %786 = vset.pattern.permute.xlu0 7
    %787 = vperm.xlu0 %786, %v34
    %v788 = vpop.permute.xlu0 %787
    %790 = vset.pattern.permute.xlu0 7
    %791 = vperm.xlu0 %790, %v35
    %v792 = vpop.permute.xlu0 %791
    %794 = vset.pattern.permute.xlu0 7
    %795 = vperm.xlu0 %794, %v36
    %v796 = vpop.permute.xlu0 %795
    %798 = vset.pattern.permute.xlu0 7
    %799 = vperm.xlu0 %798, %v37
    %v800 = vpop.permute.xlu0 %799
    %v802 = vmul.f32 %v788, %v782
    %v803 = vmul.f32 %v792, %v783
    %v804 = vmul.f32 %v796, %v784
    %v805 = vmul.f32 %v800, %v785
    %806 = vset.pattern.permute.xlu0 8
    %807 = vperm.xlu0 %806, %v34
    %v808 = vpop.permute.xlu0 %807
    %810 = vset.pattern.permute.xlu0 8
    %811 = vperm.xlu0 %810, %v35
    %v812 = vpop.permute.xlu0 %811
    %814 = vset.pattern.permute.xlu0 8
    %815 = vperm.xlu0 %814, %v36
    %v816 = vpop.permute.xlu0 %815
    %818 = vset.pattern.permute.xlu0 8
    %819 = vperm.xlu0 %818, %v37
    %v820 = vpop.permute.xlu0 %819
    %v822 = vadd.f32 %v802, %v808
    %v823 = vadd.f32 %v803, %v812
    %v824 = vadd.f32 %v804, %v816
    %v825 = vadd.f32 %v805, %v820
    %v826 = vmax.f32 %v822, 0.0
    %v827 = vmax.f32 %v823, 0.0
    %v828 = vmax.f32 %v824, 0.0
    %v829 = vmax.f32 %v825, 0.0
    %v830 = vld [vmem:[%s2 + $0xa0] sm:$0xff]
    %v831 = vld [vmem:[%s2 + $0xa8] sm:$0xff]
    %v832 = vld [vmem:[%s5] sm:$0xff]
    %v833 = vld [vmem:[%s5 + $0x8] sm:$0xff]
    %835 = vset.pattern.permute.xlu0 9
    %836 = vperm.xlu0 %835, %v832
    %v837 = vpop.permute.xlu0 %836
    %840 = vset.pattern.permute.xlu0 9
    %841 = vperm.xlu0 %840, %v833
    %v842 = vpop.permute.xlu0 %841
    %v845 = vsel %vm58, %v830, 0
    %v848 = vsel %vm58, %v831, 0
    %850 = vmatprep.subr.mxu0 0.0
    %851 = vmatpush1.msra.mxu0 0.0
    %852 = vmatprep.subr.mxu0 0.0
    %853 = vmatpush1.msra.mxu0 0.0
    %854 = vmatprep.subr.mxu0 0.0
    %855 = vmatpush1.msra.mxu0 0.0
    %856 = vmatprep.subr.mxu0 0.0
    %857 = vmatpush1.msra.mxu0 0.0
    %858 = vmatprep.subr.mxu0 0.0
    %859 = vmatpush1.msra.mxu0 0.0
    %860 = vmatprep.subr.mxu0 0.0
    %861 = vmatpush1.msra.mxu0 0.0
    %862 = vmatprep.subr.mxu0 0.0
    %863 = vmatpush1.msra.mxu0 0.0
    %864 = vmatprep.subr.mxu0 0.0
    %865 = vmatpush1.msra.mxu0 0.0
    %866 = vmatprep.subr.mxu0 0.0
    %867 = vmatpush1.msra.mxu0 0.0
    %868 = vmatprep.subr.mxu0 0.0
    %869 = vmatpush1.msra.mxu0 0.0
    %870 = vmatprep.subr.mxu0 0.0
    %871 = vmatpush1.msra.mxu0 0.0
    %872 = vmatprep.subr.mxu0 0.0
    %873 = vmatpush1.msra.mxu0 0.0
    %874 = vmatprep.subr.mxu0 0.0
    %875 = vmatpush1.msra.mxu0 %v829
    %876 = vmatprep.subr.mxu0 0.0
    %877 = vmatpush1.msra.mxu0 %v828
    %878 = vmatprep.subr.mxu0 0.0
    %879 = vmatpush1.msra.mxu0 %v827
    %880 = vmatprep.subr.mxu0 0.0
    %881 = vmatpush1.msra.mxu0 %v826
    %882 = vmatprep.subr.mxu0 0.0
    %883 = vmatpush2.msra.mxu0 0.0
    %884 = vmatprep.subr.mxu0 0.0
    %885 = vmatpush2.msra.mxu0 0.0
    %886 = vmatprep.subr.mxu0 0.0
    %887 = vmatpush2.msra.mxu0 0.0
    %888 = vmatprep.subr.mxu0 0.0
    %889 = vmatpush2.msra.mxu0 0.0
    %890 = vmatprep.subr.mxu0 0.0
    %891 = vmatpush2.msra.mxu0 0.0
    %892 = vmatprep.subr.mxu0 0.0
    %893 = vmatpush2.msra.mxu0 0.0
    %894 = vmatprep.subr.mxu0 0.0
    %895 = vmatpush2.msra.mxu0 0.0
    %896 = vmatprep.subr.mxu0 0.0
    %897 = vmatpush2.msra.mxu0 0.0
    %898 = vmatprep.subr.mxu0 0.0
    %899 = vmatpush2.msra.mxu0 0.0
    %900 = vmatprep.subr.mxu0 0.0
    %901 = vmatpush2.msra.mxu0 0.0
    %902 = vmatprep.subr.mxu0 0.0
    %903 = vmatpush2.msra.mxu0 0.0
    %904 = vmatprep.subr.mxu0 0.0
    %905 = vmatpush2.msra.mxu0 0.0
    %906 = vmatprep.subr.mxu0 0.0
    %907 = vmatpush2.msra.mxu0 0.0
    %908 = vmatprep.subr.mxu0 0.0
    %909 = vmatpush2.msra.mxu0 0.0
    %910 = vmatprep.subr.mxu0 0.0
    %911 = vmatpush2.msra.mxu0 0.0
    %912 = vmatprep.subr.mxu0 0.0
    %913 = vmatpush2.msra.mxu0 0.0
    %914 = vmatprep.mubr.f32.mxu0 0.0
    %915 = vmatmul.mubr.f32.gmra.mxu0 %v845
    %v916 = vpop.f32.mrf.mxu0
    %v917 = vadd.f32 %v837, %v916
    %v918 = vpop.f32.mrf.mxu0
    %919 = vmatprep.mubr.f32.mxu0 0.0
    %920 = vmatmul.mubr.f32.gmra.mxu0 %v848
    %v921 = vpop.f32.mrf.mxu0
    %v922 = vadd.f32 %v842, %v921
    %v923 = vpop.f32.mrf.mxu0
    %924 = vdwg.mxu0
    %v925 = vmax.f32 %v917, 0.0
    %v926 = vmax.f32 %v922, 0.0
    %927 = vset.pattern.permute.xlu0 10
    %928 = vperm.xlu0 %927, %v832
    %v929 = vpop.permute.xlu0 %928
    %931 = vset.pattern.permute.xlu0 10
    %932 = vperm.xlu0 %931, %v833
    %v933 = vpop.permute.xlu0 %932
    %v935 = vmul.f32 %v929, %v925
    %v936 = vmul.f32 %v933, %v926
    %937 = vset.pattern.permute.xlu0 11
    %938 = vperm.xlu0 %937, %v832
    %v939 = vpop.permute.xlu0 %938
    %941 = vset.pattern.permute.xlu0 11
    %942 = vperm.xlu0 %941, %v833
    %v943 = vpop.permute.xlu0 %942
    %v945 = vadd.f32 %v935, %v939
    %v946 = vadd.f32 %v936, %v943
    %v947 = vmax.f32 %v945, 0.0
    %v948 = vmax.f32 %v946, 0.0
    %v949 = vld [vmem:[%s3 + $0x20] sm:$0xff]
    %v950 = vld [vmem:[%s5] sm:$0xff]
    %952 = vset.pattern.permute.xlu0 12
    %953 = vperm.xlu0 %952, %v950
    %v954 = vpop.permute.xlu0 %953
    %v957 = vsel %vm567, %v949, 0
    %959 = vmatprep.subr.mxu0 0.0
    %960 = vmatpush1.msra.mxu0 0.0
    %961 = vmatprep.subr.mxu0 0.0
    %962 = vmatpush1.msra.mxu0 0.0
    %963 = vmatprep.subr.mxu0 0.0
    %964 = vmatpush1.msra.mxu0 0.0
    %965 = vmatprep.subr.mxu0 0.0
    %966 = vmatpush1.msra.mxu0 0.0
    %967 = vmatprep.subr.mxu0 0.0
    %968 = vmatpush1.msra.mxu0 0.0
    %969 = vmatprep.subr.mxu0 0.0
    %970 = vmatpush1.msra.mxu0 0.0
    %971 = vmatprep.subr.mxu0 0.0
    %972 = vmatpush1.msra.mxu0 0.0
    %973 = vmatprep.subr.mxu0 0.0
    %974 = vmatpush1.msra.mxu0 0.0
    %975 = vmatprep.subr.mxu0 0.0
    %976 = vmatpush1.msra.mxu0 0.0
    %977 = vmatprep.subr.mxu0 0.0
    %978 = vmatpush1.msra.mxu0 0.0
    %979 = vmatprep.subr.mxu0 0.0
    %980 = vmatpush1.msra.mxu0 0.0
    %981 = vmatprep.subr.mxu0 0.0
    %982 = vmatpush1.msra.mxu0 0.0
    %983 = vmatprep.subr.mxu0 0.0
    %984 = vmatpush1.msra.mxu0 0.0
    %985 = vmatprep.subr.mxu0 0.0
    %986 = vmatpush1.msra.mxu0 0.0
    %987 = vmatprep.subr.mxu0 0.0
    %988 = vmatpush1.msra.mxu0 %v948
    %989 = vmatprep.subr.mxu0 0.0
    %990 = vmatpush1.msra.mxu0 %v947
    %991 = vmatprep.subr.mxu0 0.0
    %992 = vmatpush2.msra.mxu0 0.0
    %993 = vmatprep.subr.mxu0 0.0
    %994 = vmatpush2.msra.mxu0 0.0
    %995 = vmatprep.subr.mxu0 0.0
    %996 = vmatpush2.msra.mxu0 0.0
    %997 = vmatprep.subr.mxu0 0.0
    %998 = vmatpush2.msra.mxu0 0.0
    %999 = vmatprep.subr.mxu0 0.0
    %1000 = vmatpush2.msra.mxu0 0.0
    %1001 = vmatprep.subr.mxu0 0.0
    %1002 = vmatpush2.msra.mxu0 0.0
    %1003 = vmatprep.subr.mxu0 0.0
    %1004 = vmatpush2.msra.mxu0 0.0
    %1005 = vmatprep.subr.mxu0 0.0
    %1006 = vmatpush2.msra.mxu0 0.0
    %1007 = vmatprep.subr.mxu0 0.0
    %1008 = vmatpush2.msra.mxu0 0.0
    %1009 = vmatprep.subr.mxu0 0.0
    %1010 = vmatpush2.msra.mxu0 0.0
    %1011 = vmatprep.subr.mxu0 0.0
    %1012 = vmatpush2.msra.mxu0 0.0
    %1013 = vmatprep.subr.mxu0 0.0
    %1014 = vmatpush2.msra.mxu0 0.0
    %1015 = vmatprep.subr.mxu0 0.0
    %1016 = vmatpush2.msra.mxu0 0.0
    %1017 = vmatprep.subr.mxu0 0.0
    %1018 = vmatpush2.msra.mxu0 0.0
    %1019 = vmatprep.subr.mxu0 0.0
    %1020 = vmatpush2.msra.mxu0 0.0
    %1021 = vmatprep.subr.mxu0 0.0
    %1022 = vmatpush2.msra.mxu0 0.0
    %1023 = vmatprep.mubr.f32.mxu0 0.0
    %1024 = vmatmul.mubr.f32.gmra.mxu0 %v957
    %v1025 = vpop.f32.mrf.mxu0
    %v1026 = vadd.f32 %v954, %v1025
    %v1027 = vpop.f32.mrf.mxu0
    %1028 = vdwg.mxu0
    %v1029 = vmax.f32 %v1026, 0.0
    %1030 = vset.pattern.permute.xlu0 13
    %1031 = vperm.xlu0 %1030, %v950
    %v1032 = vpop.permute.xlu0 %1031
    %v1034 = vmul.f32 %v1032, %v1029
    %1035 = vset.pattern.permute.xlu0 14
    %1036 = vperm.xlu0 %1035, %v950
    %v1037 = vpop.permute.xlu0 %1036
    %v1039 = vadd.f32 %v1034, %v1037
    %v1040 = vmax.f32 %v1039, 0.0
    %v1041 = vld [vmem:[%s4] sm:$0xff]
    %1042 = vset.pattern.permute.xlu0 15
    %1043 = vperm.xlu0 %1042, %v950
    %v1044 = vpop.permute.xlu0 %1043
    %vm1046 = vcmask 64512
    %v1048 = vsel %vm1046, %v1041, 0
    %1050 = vmatprep.subr.mxu0 0.0
    %1051 = vmatpush1.msra.mxu0 0.0
    %1052 = vmatprep.subr.mxu0 0.0
    %1053 = vmatpush1.msra.mxu0 0.0
    %1054 = vmatprep.subr.mxu0 0.0
    %1055 = vmatpush1.msra.mxu0 0.0
    %1056 = vmatprep.subr.mxu0 0.0
    %1057 = vmatpush1.msra.mxu0 0.0
    %1058 = vmatprep.subr.mxu0 0.0
    %1059 = vmatpush1.msra.mxu0 0.0
    %1060 = vmatprep.subr.mxu0 0.0
    %1061 = vmatpush1.msra.mxu0 0.0
    %1062 = vmatprep.subr.mxu0 0.0
    %1063 = vmatpush1.msra.mxu0 0.0
    %1064 = vmatprep.subr.mxu0 0.0
    %1065 = vmatpush1.msra.mxu0 0.0
    %1066 = vmatprep.subr.mxu0 0.0
    %1067 = vmatpush1.msra.mxu0 0.0
    %1068 = vmatprep.subr.mxu0 0.0
    %1069 = vmatpush1.msra.mxu0 0.0
    %1070 = vmatprep.subr.mxu0 0.0
    %1071 = vmatpush1.msra.mxu0 0.0
    %1072 = vmatprep.subr.mxu0 0.0
    %1073 = vmatpush1.msra.mxu0 0.0
    %1074 = vmatprep.subr.mxu0 0.0
    %1075 = vmatpush1.msra.mxu0 0.0
    %1076 = vmatprep.subr.mxu0 0.0
    %1077 = vmatpush1.msra.mxu0 0.0
    %1078 = vmatprep.subr.mxu0 0.0
    %1079 = vmatpush1.msra.mxu0 0.0
    %1080 = vmatprep.subr.mxu0 0.0
    %1081 = vmatpush1.msra.mxu0 %v1040
    %1082 = vmatprep.subr.mxu0 0.0
    %1083 = vmatpush2.msra.mxu0 0.0
    %1084 = vmatprep.subr.mxu0 0.0
    %1085 = vmatpush2.msra.mxu0 0.0
    %1086 = vmatprep.subr.mxu0 0.0
    %1087 = vmatpush2.msra.mxu0 0.0
    %1088 = vmatprep.subr.mxu0 0.0
    %1089 = vmatpush2.msra.mxu0 0.0
    %1090 = vmatprep.subr.mxu0 0.0
    %1091 = vmatpush2.msra.mxu0 0.0
    %1092 = vmatprep.subr.mxu0 0.0
    %1093 = vmatpush2.msra.mxu0 0.0
    %1094 = vmatprep.subr.mxu0 0.0
    %1095 = vmatpush2.msra.mxu0 0.0
    %1096 = vmatprep.subr.mxu0 0.0
    %1097 = vmatpush2.msra.mxu0 0.0
    %1098 = vmatprep.subr.mxu0 0.0
    %1099 = vmatpush2.msra.mxu0 0.0
    %1100 = vmatprep.subr.mxu0 0.0
    %1101 = vmatpush2.msra.mxu0 0.0
    %1102 = vmatprep.subr.mxu0 0.0
    %1103 = vmatpush2.msra.mxu0 0.0
    %1104 = vmatprep.subr.mxu0 0.0
    %1105 = vmatpush2.msra.mxu0 0.0
    %1106 = vmatprep.subr.mxu0 0.0
    %1107 = vmatpush2.msra.mxu0 0.0
    %1108 = vmatprep.subr.mxu0 0.0
    %1109 = vmatpush2.msra.mxu0 0.0
    %1110 = vmatprep.subr.mxu0 0.0
    %1111 = vmatpush2.msra.mxu0 0.0
    %1112 = vmatprep.subr.mxu0 0.0
    %1113 = vmatpush2.msra.mxu0 0.0
    %1114 = vmatprep.mubr.f32.mxu0 0.0
    %1115 = vmatmul.mubr.f32.gmra.mxu0 %v1048
    %v1116 = vpop.f32.mrf.mxu0
    %v1117 = vadd.f32 %v1044, %v1116
    %v1118 = vpop.f32.mrf.mxu0
    %1119 = vdwg.mxu0
    %v1120 = vmax.f32 %v1117, 0.0
    %1121 = vst.msk [vmem:[#allocation2] sm:$0xff] %vm567, %v1120
    // Predicated region
    $region26: #{model_attention_forward.1} parent=1 // pred_check
      _
    $region27: #{model_attention_forward.1} parent=1 // pred_check_branch
      %1123 = sbr.rel (0) target = $region29
    $region28: #{model_attention_forward.1} parent=1 // pred_region
      %s1125 = ssub.s32 128, 128
      %1126 = vsyncadd [#allocation3], %s1125
      %s1128 = sshll.u32 [#allocation2], 4
      %s1129 = int_to_ptr.vmem [resolvable:$true] %s1128
      %1131 = dma.vmem_to_hbm [thread:$0]  %s1129, 128, %s6, [#allocation3]
    $region29: #{model_attention_forward.1} parent=1 // pred_fallthru
      _
    // Predicated region
    $region30: #{model_attention_forward.1} parent=1 // pred_check
      _
    $region31: #{model_attention_forward.1} parent=1 // pred_check_branch
      %1133 = sbr.rel (0) target = $region33
    $region32: #{model_attention_forward.1} parent=1 // pred_region
      %1134 = dma.done [#allocation3], 128
    $region33: #{model_attention_forward.1} parent=1 // pred_fallthru
      _
    %1135 = vsyncpa [#allocation3], 1

</llo_original>
